<compile_context>
chip_gen: v5e
topology: v5e:2x2
jax: 0.10.0
libtpu: 0.0.40
codegen_flags: <defaults>
</compile_context>

<pallas_src>
import functools

import jax
import jax.numpy as jnp
from jax.experimental import pallas as pl
from jax.experimental.pallas import tpu as pltpu

WINDOW = 50               # price lookback (forced by conv kernels (1,3) then (1,48))
N_ASSETS = 8              # "m" non-cash assets (small example size)
C2 = 20                   # conv2 output channels
CONV1_OUT = WINDOW - 2    # 48
AUG = WINDOW + 2          # data row layout: [price(50) | wt | 1]


def _cnn_kernel(data_ref,   # VMEM (bt*m, 52)  rows = (sample, asset); lanes = price|wt|1
                w1_ref,     # VMEM (52, 48)    banded conv1 taps + (wt->0) + (1->b1)
                w2_ref,     # VMEM (50, 20)    conv2.T         + (wt->0) + (1->b2)
                w3_ref,     # VMEM (22, 2)     col0: conv3 mix + b3 ; col1: cash bias
                out_ref,    # VMEM (bt, m+1, 1) softmax portfolio weights per sample
                *, bt, m):
    data = data_ref[...]                               # (rows, 52)
    aux = data[:, WINDOW:WINDOW + 2]                   # (rows, 2): [wt, 1]

    # conv1 (1x3 along time) as one banded MXU matmul; bias folded via the ones lane.
    a = jnp.dot(data, w1_ref[...], preferred_element_type=jnp.float32)
    a = jnp.maximum(a, 0.0)                            # (rows, 48)

    # conv2 (1x48) collapses time; bias folded via the ones lane of `aux`.
    a_aug = jnp.concatenate([a, aux], axis=1)          # (rows, 50)
    z = jnp.dot(a_aug, w2_ref[...], preferred_element_type=jnp.float32)
    z = jnp.maximum(z, 0.0)                            # (rows, 20)

    # conv3 (1x1): mixes [conv2 channels, wt] + bias; column 1 reproduces the cash bias.
    z_aug = jnp.concatenate([z, aux], axis=1)          # (rows, 22)
    o = jnp.dot(z_aug, w3_ref[...], preferred_element_type=jnp.float32)   # (rows, 2)
    out3 = o[:, 0:1]                                   # (rows, 1) per-asset logit
    cash = o[0:1, 1:2]                                 # (1, 1)  cash-bias logit

    # Block-global max shift (softmax is shift-invariant per sample); one
    # vectorized exp over all rows instead of bt small exps inside the loop.
    gmax = jnp.maximum(jnp.max(out3, keepdims=True), cash)   # (1, 1)
    e_all = jnp.exp(out3 - gmax)                              # (rows, 1)
    e_cash = jnp.exp(cash - gmax)                             # (1, 1)

    # Per-sample: prepend the cash term and normalize over the (m+1) entries.
    # bt is small and static -> unrolled; all slices are sublane-tile aligned.
    for s in range(bt):
        es = e_all[s * m:(s + 1) * m, :]                       # (m, 1)
        ssum = jnp.sum(es, axis=0, keepdims=True) + e_cash     # (1, 1)
        inv = pl.reciprocal(ssum, approx=True)                 # EUP slot (otherwise idle)
        inv = inv * (2.0 - ssum * inv)                         # Newton step -> ~f32 accuracy
        out_ref[s] = jnp.concatenate([e_cash, es], axis=0) * inv


def _pick_batch_tile(batch, m):
    """Largest divisor of `batch` whose row count bt*m fills (<=) the 128-row MXU face."""
    cap = max(1, 128 // m)
    for bt in range(min(batch, cap), 0, -1):
        if batch % bt == 0 and ((bt * m) % 8 == 0 or bt == batch):
            return bt
    return batch


def _augmented_weights(params):
    """Fold conv weights/biases (+ wt channel + cash bias) into 3 dense slabs."""
    w1 = params["conv1_w"].reshape(3).astype(jnp.float32)
    b1 = params["conv1_b"].reshape(()).astype(jnp.float32)
    w2 = params["conv2_w"].reshape(C2, CONV1_OUT).astype(jnp.float32)
    b2 = params["conv2_b"].reshape(1, C2).astype(jnp.float32)
    w3 = params["conv3_w"].reshape(C2 + 1).astype(jnp.float32)   # [wt, ch1..ch20]
    b3 = params["conv3_b"].reshape(1, 1).astype(jnp.float32)
    cash = params["cash_bias"].reshape(1, 1).astype(jnp.float32)

    # banded conv1 matrix: band[t, j] = w1[t - j] for (t - j) in {0, 1, 2}
    t = jnp.arange(WINDOW)[:, None]
    j = jnp.arange(CONV1_OUT)[None, :]
    d = t - j
    band = jnp.where((d >= 0) & (d <= 2), w1[jnp.clip(d, 0, 2)], 0.0)     # (50, 48)
    w1aug = jnp.concatenate(
        [band,
         jnp.zeros((1, CONV1_OUT), jnp.float32),                           # wt lane -> 0
         jnp.full((1, CONV1_OUT), b1, jnp.float32)], axis=0)               # ones lane -> b1

    w2aug = jnp.concatenate(
        [w2.T, jnp.zeros((1, C2), jnp.float32), b2], axis=0)               # (50, 20)

    col0 = jnp.concatenate([w3[1:].reshape(C2, 1), w3[0].reshape(1, 1), b3], axis=0)
    col1 = jnp.concatenate([jnp.zeros((C2 + 1, 1), jnp.float32), cash], axis=0)
    w3aug = jnp.concatenate([col0, col1], axis=1)                          # (22, 2)
    return w1aug, w2aug, w3aug


def cnn_forward_batched(price, wt, params):
    """price: (B, A+1, 50); wt: (B, A+1). Returns softmax portfolio weights (B, A+1)."""
    batch, a1, _ = price.shape
    m = a1 - 1
    bt = _pick_batch_tile(batch, m)

    p = price[:, 1:, :].astype(jnp.float32)                      # (B, m, 50)
    w = wt[:, 1:].astype(jnp.float32)[..., None]                 # (B, m, 1)
    ones = jnp.ones((batch, m, 1), jnp.float32)
    data = jnp.concatenate([p, w, ones], axis=-1).reshape(batch * m, AUG)

    w1aug, w2aug, w3aug = _augmented_weights(params)

    kernel = functools.partial(_cnn_kernel, bt=bt, m=m)
    out = pl.pallas_call(
        kernel,
        out_shape=jax.ShapeDtypeStruct((batch, m + 1, 1), jnp.float32),
        grid=(batch // bt,),
        in_specs=[
            pl.BlockSpec((bt * m, AUG), lambda i: (i, 0)),
            pl.BlockSpec((AUG, CONV1_OUT), lambda i: (0, 0)),
            pl.BlockSpec((CONV1_OUT + 2, C2), lambda i: (0, 0)),
            pl.BlockSpec((C2 + 2, 2), lambda i: (0, 0)),
        ],
        out_specs=pl.BlockSpec((bt, m + 1, 1), lambda i: (i, 0, 0)),
        compiler_params=pltpu.CompilerParams(
            dimension_semantics=("parallel",)),    # batch tiles are independent
    )(data, w1aug, w2aug, w3aug)
    return out.reshape(batch, m + 1)


def cnn_forward(price, wt, params):
    """Module-shaped entry: price (1, 1, A+1, 50) NCHW, wt (A+1,). Returns (1, A+1)."""
    a1 = price.shape[2]
    return cnn_forward_batched(price.reshape(1, a1, WINDOW), wt.reshape(1, a1), params)


def reference_forward(price, wt, params):
    """Pure-JAX replica of the PyTorch forward (uses lax conv) for checking."""
    def conv2d(x, w, b):
        y = jax.lax.conv_general_dilated(
            x, w, window_strides=(1, 1), padding="VALID",
            dimension_numbers=("NCHW", "OIHW", "NCHW"))
        return y + b.reshape(1, -1, 1, 1)

    p = price[:, :, 1:, :]
    w = wt[1:].reshape(1, 1, -1, 1)
    out = jax.nn.relu(conv2d(p, params["conv1_w"], params["conv1_b"]))
    out = jax.nn.relu(conv2d(out, params["conv2_w"], params["conv2_b"]))
    out = jnp.concatenate([w, out], axis=1)
    out = conv2d(out, params["conv3_w"], params["conv3_b"])
    out = jnp.concatenate([params["cash_bias"], out], axis=2)
    out = out.reshape(-1, out.shape[2])
    return jax.nn.softmax(out, axis=1)


def init_params(key):
    ks = jax.random.split(key, 6)
    return {
        "cash_bias": jnp.ones((1, 1, 1, 1), jnp.float32),              # nn.Parameter(torch.ones)
        "conv1_w": 0.3 * jax.random.normal(ks[0], (1, 1, 1, 3), jnp.float32),
        "conv1_b": 0.1 * jax.random.normal(ks[1], (1,), jnp.float32),
        "conv2_w": 0.1 * jax.random.normal(ks[2], (C2, 1, 1, 48), jnp.float32),
        "conv2_b": 0.1 * jax.random.normal(ks[3], (C2,), jnp.float32),
        "conv3_w": 0.3 * jax.random.normal(ks[4], (1, C2 + 1, 1, 1), jnp.float32),
        "conv3_b": 0.1 * jax.random.normal(ks[5], (1,), jnp.float32),
    }


if __name__ == "__main__":
    key = jax.random.PRNGKey(0)
    k_p, k_w, k_params, k_bp, k_bw = jax.random.split(key, 5)
    params = init_params(k_params)

    # --- module-shaped single sample: price (1,1,A+1,50) NCHW, wt (A+1,) ---
    price = 1.0 + 0.05 * jax.random.normal(k_p, (1, 1, N_ASSETS + 1, WINDOW), jnp.float32)
    wt = jax.nn.softmax(jax.random.normal(k_w, (N_ASSETS + 1,), jnp.float32))

    out = jax.block_until_ready(cnn_forward(price, wt, params))
    ref = reference_forward(price, wt, params)
    assert out.shape == (1, N_ASSETS + 1)
    assert jnp.allclose(out, ref, atol=1e-4, rtol=1e-4), (out, ref)
    assert jnp.allclose(jnp.sum(out), 1.0, atol=1e-5)

    # --- batched throughput path: 32 independent samples, one launch --------
    B = 32
    price_b = 1.0 + 0.05 * jax.random.normal(k_bp, (B, N_ASSETS + 1, WINDOW), jnp.float32)
    wt_b = jax.nn.softmax(jax.random.normal(k_bw, (B, N_ASSETS + 1), jnp.float32), axis=-1)

    out_b = jax.block_until_ready(cnn_forward_batched(price_b, wt_b, params))
    ref_b = jax.vmap(lambda p, w: reference_forward(p[None, None], w, params)[0])(price_b, wt_b)
    assert out_b.shape == (B, N_ASSETS + 1)
    assert jnp.allclose(out_b, ref_b, atol=1e-4, rtol=1e-4), (out_b, ref_b)
    assert jnp.allclose(jnp.sum(out_b, axis=-1), 1.0, atol=1e-5)

    print("KERNEL_OK")
</pallas_src>

<mosaic_0001>
module attributes {stable_mosaic.version = 11 : i64} {
  func.func @_cnn_kernel(%arg0: i32, %arg1: memref<8x52xf32, #tpu.memory_space<vmem>>, %arg2: memref<52x48xf32, #tpu.memory_space<vmem>>, %arg3: memref<50x20xf32, #tpu.memory_space<vmem>>, %arg4: memref<22x2xf32, #tpu.memory_space<vmem>>, %arg5: memref<1x9x1xf32, #tpu.memory_space<vmem>>) attributes {dimension_semantics = [#tpu.dimension_semantics<parallel>], iteration_bounds = array<i64: 1>, scalar_prefetch = 0 : i64, scratch_operands = 0 : i64, tpu.core_type = #tpu.core_type<tc>, window_params = [{transform_indices = @transform_0, window_bounds = array<i64: 8, 52>}, {pipeline_mode = #tpu.pipeline_mode<synchronous>, transform_indices = @transform_1, window_bounds = array<i64: 52, 48>}, {pipeline_mode = #tpu.pipeline_mode<synchronous>, transform_indices = @transform_2, window_bounds = array<i64: 50, 20>}, {pipeline_mode = #tpu.pipeline_mode<synchronous>, transform_indices = @transform_3, window_bounds = array<i64: 22, 2>}, {transform_indices = @transform_4, window_bounds = array<i64: 1, 9, 1>}]} {
    %c0 = arith.constant 0 : index
    %c0_0 = arith.constant 0 : index
    %0 = vector.load %arg1[%c0, %c0_0] : memref<8x52xf32, #tpu.memory_space<vmem>>, vector<8x52xf32>
    %1 = vector.extract_strided_slice %0 {offsets = [0, 50], sizes = [8, 2], strides = [1, 1]} : vector<8x52xf32> to vector<8x2xf32>
    %c0_1 = arith.constant 0 : index
    %c0_2 = arith.constant 0 : index
    %2 = vector.load %arg2[%c0_1, %c0_2] : memref<52x48xf32, #tpu.memory_space<vmem>>, vector<52x48xf32>
    %cst = arith.constant dense<0.000000e+00> : vector<8x48xf32>
    %3 = tpu.matmul %0, %2, %cst {dimension_numbers = #tpu.dot_dimension_numbers<[1], [0], [0], [1], [0, 0, 1, 1], [], []>} : vector<8x52xf32>, vector<52x48xf32>, vector<8x48xf32> -> vector<8x48xf32>
    %cst_3 = arith.constant 0.000000e+00 : f32
    %4 = vector.broadcast %cst_3 : f32 to vector<8x48xf32>
    %5 = arith.maximumf %3, %4 : vector<8x48xf32>
    %6 = tpu.concatenate %5, %1 in 1 : vector<8x48xf32>, vector<8x2xf32> -> vector<8x50xf32>
    %c0_4 = arith.constant 0 : index
    %c0_5 = arith.constant 0 : index
    %7 = vector.load %arg3[%c0_4, %c0_5] : memref<50x20xf32, #tpu.memory_space<vmem>>, vector<50x20xf32>
    %cst_6 = arith.constant dense<0.000000e+00> : vector<8x20xf32>
    %8 = tpu.matmul %6, %7, %cst_6 {dimension_numbers = #tpu.dot_dimension_numbers<[1], [0], [0], [1], [0, 0, 1, 1], [], []>} : vector<8x50xf32>, vector<50x20xf32>, vector<8x20xf32> -> vector<8x20xf32>
    %cst_7 = arith.constant 0.000000e+00 : f32
    %9 = vector.broadcast %cst_7 : f32 to vector<8x20xf32>
    %10 = arith.maximumf %8, %9 : vector<8x20xf32>
    %11 = tpu.concatenate %10, %1 in 1 : vector<8x20xf32>, vector<8x2xf32> -> vector<8x22xf32>
    %c0_8 = arith.constant 0 : index
    %c0_9 = arith.constant 0 : index
    %12 = vector.load %arg4[%c0_8, %c0_9] : memref<22x2xf32, #tpu.memory_space<vmem>>, vector<22x2xf32>
    %cst_10 = arith.constant dense<0.000000e+00> : vector<8x2xf32>
    %13 = tpu.matmul %11, %12, %cst_10 {dimension_numbers = #tpu.dot_dimension_numbers<[1], [0], [0], [1], [0, 0, 1, 1], [], []>} : vector<8x22xf32>, vector<22x2xf32>, vector<8x2xf32> -> vector<8x2xf32>
    %14 = vector.extract_strided_slice %13 {offsets = [0, 0], sizes = [8, 1], strides = [1, 1]} : vector<8x2xf32> to vector<8x1xf32>
    %15 = vector.extract_strided_slice %13 {offsets = [0, 1], sizes = [1, 1], strides = [1, 1]} : vector<8x2xf32> to vector<1x1xf32>
    %16 = vector.shape_cast %14 : vector<8x1xf32> to vector<1x8x1xf32>
    %cst_11 = arith.constant dense<0xFF800000> : vector<1xf32>
    %17 = vector.multi_reduction <maximumf>, %16, %cst_11 [1, 2] : vector<1x8x1xf32> to vector<1xf32>
    %18 = vector.shape_cast %17 : vector<1xf32> to vector<1x1x1xf32>
    %19 = vector.extract %18[0, 0, 0] : f32 from vector<1x1x1xf32>
    %20 = vector.broadcast %19 : f32 to vector<1x1xf32>
    %21 = arith.maximumf %20, %15 : vector<1x1xf32>
    %22 = vector.broadcast %21 : vector<1x1xf32> to vector<8x1xf32>
    %23 = arith.subf %14, %22 : vector<8x1xf32>
    %24 = math.exp %23 : vector<8x1xf32>
    %25 = arith.subf %15, %21 : vector<1x1xf32>
    %26 = math.exp %25 : vector<1x1xf32>
    %cst_12 = arith.constant dense<0.000000e+00> : vector<1xf32>
    %27 = vector.multi_reduction <add>, %24, %cst_12 [0] : vector<8x1xf32> to vector<1xf32>
    %28 = vector.shape_cast %27 : vector<1xf32> to vector<1x1xf32>
    %29 = arith.addf %28, %26 : vector<1x1xf32>
    %30 = tpu.reciprocal %29 {approx = true} : vector<1x1xf32> -> vector<1x1xf32>
    %31 = arith.mulf %29, %30 : vector<1x1xf32>
    %cst_13 = arith.constant 2.000000e+00 : f32
    %32 = vector.broadcast %cst_13 : f32 to vector<1x1xf32>
    %33 = arith.subf %32, %31 : vector<1x1xf32>
    %34 = arith.mulf %30, %33 : vector<1x1xf32>
    %35 = tpu.concatenate %26, %24 in 0 : vector<1x1xf32>, vector<8x1xf32> -> vector<9x1xf32>
    %36 = vector.broadcast %34 : vector<1x1xf32> to vector<9x1xf32>
    %37 = arith.mulf %35, %36 : vector<9x1xf32>
    %c0_14 = arith.constant 0 : index
    %c0_15 = arith.constant 0 : index
    %c0_16 = arith.constant 0 : index
    %38 = vector.load %arg5[%c0_14, %c0_15, %c0_16] : memref<1x9x1xf32, #tpu.memory_space<vmem>>, vector<1x9x1xf32>
    %39 = vector.shape_cast %38 : vector<1x9x1xf32> to vector<9x1xf32>
    %40 = vector.shape_cast %37 : vector<9x1xf32> to vector<1x9x1xf32>
    tpu.vector_store %arg5[%c0_14, %c0_15, %c0_16], %40 {strides = array<i32>} : memref<1x9x1xf32, #tpu.memory_space<vmem>>, vector<1x9x1xf32>,
    return
  }
  func.func @transform_0(%arg0: i32) -> (i32, i32) {
    %c0_i32 = arith.constant 0 : i32
    %c0_i32_0 = arith.constant 0 : i32
    return %arg0, %c0_i32 : i32, i32
  }
  func.func @transform_1(%arg0: i32) -> (i32, i32) {
    %c0_i32 = arith.constant 0 : i32
    %c0_i32_0 = arith.constant 0 : i32
    %c0_i32_1 = arith.constant 0 : i32
    return %c0_i32, %c0_i32_0 : i32, i32
  }
  func.func @transform_2(%arg0: i32) -> (i32, i32) {
    %c0_i32 = arith.constant 0 : i32
    %c0_i32_0 = arith.constant 0 : i32
    %c0_i32_1 = arith.constant 0 : i32
    return %c0_i32, %c0_i32_0 : i32, i32
  }
  func.func @transform_3(%arg0: i32) -> (i32, i32) {
    %c0_i32 = arith.constant 0 : i32
    %c0_i32_0 = arith.constant 0 : i32
    %c0_i32_1 = arith.constant 0 : i32
    return %c0_i32, %c0_i32_0 : i32, i32
  }
  func.func @transform_4(%arg0: i32) -> (i32, i32, i32) {
    %c0_i32 = arith.constant 0 : i32
    %c0_i32_0 = arith.constant 0 : i32
    %c0_i32_1 = arith.constant 0 : i32
    return %arg0, %c0_i32, %c0_i32_0 : i32, i32, i32
  }
}

</mosaic_0001>

<llo_original>
// kernel: tpu_custom_call.1
$region0: #{tpu_custom_call.1}
  #allocation0 [shape = 'u32[]', space=smem, size = 0x4, offset = 0x4, fixed_abs, tag = 'smem constant byte address 0x4 - core index']
  #allocation1 [shape = 'u32[72,128]{1,0:T(1,128)}', space=vmem, size = 0x9000, scoped, tag = 'internal scratch']
  %s0 = inlined_call_operand.vmem [shape: f32[8,52], index: 0, kind: input, shape index: {}]
  %s1 = inlined_call_operand.vmem [shape: f32[52,48], index: 1, kind: input, shape index: {}]
  %s2 = inlined_call_operand.vmem [shape: f32[50,20], index: 2, kind: input, shape index: {}]
  %s3 = inlined_call_operand.vmem [shape: f32[22,2], index: 3, kind: input, shape index: {}]
  %s4 = inlined_call_operand.vmem [shape: f32[1,9,1], index: 4, kind: output, shape index: {}]
  %s5 = sld [smem:[#allocation0]]
  $region26: #{tpu_custom_call.1} parent=0
    _
  %s7 = ssub.s32 1, %s5
  %s8 = scalar_select 0, %s7, %s5
  // Predicated region
  $region2: #{tpu_custom_call.1} parent=0 // pred_check
    _
  $region3: #{tpu_custom_call.1} parent=0 // pred_check_branch
    %10 = sbr.rel (0) target = $region5
  $region4: #{tpu_custom_call.1} parent=0 // pred_region
    _
  $region5: #{tpu_custom_call.1} parent=0 // pred_fallthru
    _
  // Predicated region
  $region6: #{tpu_custom_call.1} parent=0 // pred_check
    _
  $region7: #{tpu_custom_call.1} parent=0 // pred_check_branch
    %12 = sbr.rel (0) target = $region9
  $region8: #{tpu_custom_call.1} parent=0 // pred_region
    _
  $region9: #{tpu_custom_call.1} parent=0 // pred_fallthru
    _
  // Predicated region
  $region10: #{tpu_custom_call.1} parent=0 // pred_check
    _
  $region11: #{tpu_custom_call.1} parent=0 // pred_check_branch
    %14 = sbr.rel (0) target = $region13
  $region12: #{tpu_custom_call.1} parent=0 // pred_region
    _
  $region13: #{tpu_custom_call.1} parent=0 // pred_fallthru
    _
  // Predicated region
  $region14: #{tpu_custom_call.1} parent=0 // pred_check
    _
  $region15: #{tpu_custom_call.1} parent=0 // pred_check_branch
    %16 = sbr.rel (0) target = $region17
  $region16: #{tpu_custom_call.1} parent=0 // pred_region
    _
  $region17: #{tpu_custom_call.1} parent=0 // pred_fallthru
    _
  %v17 = vld [vmem:[%s0] sm:$0xff]
  %v18 = vld [vmem:[%s1] sm:$0xff]
  %v19 = vld [vmem:[%s1 + $0x8] sm:$0xff]
  %v20 = vld [vmem:[%s1 + $0x10] sm:$0xff]
  %v21 = vld [vmem:[%s1 + $0x18] sm:$0xff]
  %v22 = vld [vmem:[%s1 + $0x20] sm:$0xff]
  %v23 = vld [vmem:[%s1 + $0x28] sm:$0xff]
  %v24 = vld [vmem:[%s1 + $0x30] sm:$0xf]
  %vm25 = vcmask 424960
  %v27 = vsel %vm25, %v17, 0
  %vm29 = vcmask 1043456
  %v31 = vsel %vm29, %v24, 0
  %33 = vmatpush.msra.mxu0 0.0
  %34 = vmatpush.msra.mxu0 0.0
  %35 = vmatpush.msra.mxu0 0.0
  %36 = vmatpush.msra.mxu0 0.0
  %37 = vmatpush.msra.mxu0 0.0
  %38 = vmatpush.msra.mxu0 0.0
  %39 = vmatpush.msra.mxu0 0.0
  %40 = vmatpush.msra.mxu0 0.0
  %41 = vmatpush.msra.mxu0 0.0
  %42 = vmatpush.msra.mxu0 %v31
  %43 = vmatpush.msra.mxu0 %v23
  %44 = vmatpush.msra.mxu0 %v22
  %45 = vmatpush.msra.mxu0 %v21
  %46 = vmatpush.msra.mxu0 %v20
  %47 = vmatpush.msra.mxu0 %v19
  %48 = vmatpush.msra.mxu0 %v18
  %49 = vmatmul.f32.gmra.mxu0 %v27
  %v50 = vpop.f32.mrf.mxu0
  %v51 = vadd.f32 0.0, %v50
  %52 = vdwg.mxu0
  %v53 = vmax.f32 %v51, 0.0
  %54 = vrot.lane.b32.xlu0 %v17, 126
  %v55 = vpop.permute.xlu0 %54
  %vm57 = vcmask 392192
  %v58 = vsel %vm57, %v53, %v55
  %v59 = vld [vmem:[%s2] sm:$0xff]
  %v60 = vld [vmem:[%s2 + $0x8] sm:$0xff]
  %v61 = vld [vmem:[%s2 + $0x10] sm:$0xff]
  %v62 = vld [vmem:[%s2 + $0x18] sm:$0xff]
  %v63 = vld [vmem:[%s2 + $0x20] sm:$0xff]
  %v64 = vld [vmem:[%s2 + $0x28] sm:$0xff]
  %v65 = vld [vmem:[%s2 + $0x30] sm:$0x3]
  %vm66 = vcmask 408576
  %v68 = vsel %vm66, %v58, 0
  %vm70 = vcmask 1041408
  %v72 = vsel %vm70, %v65, 0
  %74 = vmatpush.msra.mxu0 0.0
  %75 = vmatpush.msra.mxu0 0.0
  %76 = vmatpush.msra.mxu0 0.0
  %77 = vmatpush.msra.mxu0 0.0
  %78 = vmatpush.msra.mxu0 0.0
  %79 = vmatpush.msra.mxu0 0.0
  %80 = vmatpush.msra.mxu0 0.0
  %81 = vmatpush.msra.mxu0 0.0
  %82 = vmatpush.msra.mxu0 0.0
  %83 = vmatpush.msra.mxu0 %v72
  %84 = vmatpush.msra.mxu0 %v64
  %85 = vmatpush.msra.mxu0 %v63
  %86 = vmatpush.msra.mxu0 %v62
  %87 = vmatpush.msra.mxu0 %v61
  %88 = vmatpush.msra.mxu0 %v60
  %89 = vmatpush.msra.mxu0 %v59
  %90 = vmatmul.f32.gmra.mxu0 %v68
  %v91 = vpop.f32.mrf.mxu0
  %v92 = vadd.f32 0.0, %v91
  %93 = vdwg.mxu0
  %v94 = vmax.f32 %v92, 0.0
  %95 = vrot.lane.b32.xlu0 %v17, 98
  %v96 = vpop.permute.xlu0 %95
  %vm98 = vcmask 162816
  %v99 = vsel %vm98, %v94, %v96
  %v100 = vld [vmem:[%s3] sm:$0xff]
  %v101 = vld [vmem:[%s3 + $0x8] sm:$0xff]
  %v102 = vld [vmem:[%s3 + $0x10] sm:$0x3f]
  %vm103 = vcmask 179200
  %v105 = vsel %vm103, %v99, 0
  %vm107 = vcmask 1045504
  %v109 = vsel %vm107, %v102, 0
  %111 = vmatpush.msra.mxu0 0.0
  %112 = vmatpush.msra.mxu0 0.0
  %113 = vmatpush.msra.mxu0 0.0
  %114 = vmatpush.msra.mxu0 0.0
  %115 = vmatpush.msra.mxu0 0.0
  %116 = vmatpush.msra.mxu0 0.0
  %117 = vmatpush.msra.mxu0 0.0
  %118 = vmatpush.msra.mxu0 0.0
  %119 = vmatpush.msra.mxu0 0.0
  %120 = vmatpush.msra.mxu0 0.0
  %121 = vmatpush.msra.mxu0 0.0
  %122 = vmatpush.msra.mxu0 0.0
  %123 = vmatpush.msra.mxu0 0.0
  %124 = vmatpush.msra.mxu0 %v109
  %125 = vmatpush.msra.mxu0 %v101
  %126 = vmatpush.msra.mxu0 %v100
  %127 = vmatmul.f32.gmra.mxu0 %v105
  %v128 = vpop.f32.mrf.mxu0
  %v129 = vadd.f32 0.0, %v128
  %130 = vdwg.mxu0
  %vm131 = vcmask 7168
  %v132 = vsel %vm131, %v129, -inf
  %133 = vmax.xlane.f32.xlu0 %v132
  %v134 = vpop.xlane.xlu0 %133
  %v135 = vrot.slane %v134, 4
  %v136 = vmax.f32 %v134, %v135
  %v137 = vrot.slane %v136, 2
  %v138 = vmax.f32 %v136, %v137
  %v139 = vrot.slane %v138, 1
  %v140 = vmax.f32 %v138, %v139
  %s141 = vtos %v140
  %v142 = vstv %s141
  %v143 = vmax.f32 %v142, %v129
  %v144 = vperm.slane %v143, 0
  %146 = vrot.lane.b32.xlu0 %v144, 127
  %v147 = vpop.permute.xlu0 %146
  %v149 = vsub.f32 %v129, %v147
  %v150 = vmul.f32 %v149, 1.442695
  %v151 = vpow.pop %v150
  %v152 = vsub.f32 %v129, %v143
  %v153 = vmul.f32 %v152, 1.442695
  %v154 = vpow.pop %v153
  %v155 = vsel %vm131, %v151, 0.0
  %v156 = vrot.slane %v155, 4
  %v157 = vadd.f32 %v155, %v156
  %v158 = vrot.slane %v157, 2
  %v159 = vadd.f32 %v157, %v158
  %v160 = vrot.slane %v159, 1
  %v161 = vadd.f32 %v159, %v160
  %163 = vrot.lane.b32.xlu0 %v154, 127
  %v164 = vpop.permute.xlu0 %163
  %v166 = vadd.f32 %v161, %v164
  %v167 = vrcp.pop %v166
  %v168 = vmul.f32 %v166, %v167
  %v169 = vsub.f32 2.0, %v168
  %v170 = vmul.f32 %v167, %v169
  %v172 = vrot.slane %v151, 7
  %173 = vrot.lane.b32.xlu0 %v172, 1
  %v174 = vpop.permute.xlu0 %173
  %vm176 = vcmask 1040384
  %v177 = vsel %vm176, %v154, %v174
  %v178 = vperm.slane %v170, 0
  %180 = vrot.lane.b32.xlu0 %v178, 1
  %v181 = vpop.permute.xlu0 %180
  %v183 = vmul.f32 %v177, %v181
  %v184 = vmul.f32 %v174, %v181
  %187 = vrot.lane.b32.xlu0 %v183, 127
  %v188 = vpop.permute.xlu0 %187
  %189 = vrot.lane.b32.xlu0 %v184, 127
  %v190 = vpop.permute.xlu0 %189
  %193 = vst.msk [vmem:[%s4] sm:$0xff] %vm131, %v188
  %vm194 = vcmask 0
  %195 = vst.msk [vmem:[%s4 + $0x8] sm:$0x1] %vm194, %v190
  // Predicated region
  $region18: #{tpu_custom_call.1} parent=0 // pred_check
    _
  $region19: #{tpu_custom_call.1} parent=0 // pred_check_branch
    %197 = sbr.rel (0) target = $region21
  $region20: #{tpu_custom_call.1} parent=0 // pred_region
    _
  $region21: #{tpu_custom_call.1} parent=0 // pred_fallthru
    _
  // Predicated region
  $region22: #{tpu_custom_call.1} parent=0 // pred_check
    _
  $region23: #{tpu_custom_call.1} parent=0 // pred_check_branch
    %199 = sbr.rel (0) target = $region25
  $region24: #{tpu_custom_call.1} parent=0 // pred_region
    _
  $region25: #{tpu_custom_call.1} parent=0 // pred_fallthru
    _

</llo_original>
